<compile_context>
chip_gen: v7x
topology: tpu7x:2x2x1
jax: 0.10.0
libtpu: 0.0.40
codegen_flags: <defaults>
</compile_context>

<pallas_src>
import functools
import math

import jax
import jax.numpy as jnp
from jax import lax
from jax.experimental import pallas as pl
from jax.experimental.pallas import tpu as pltpu


# --------------------------------------------------------------------------- #
# Tiling helpers
# --------------------------------------------------------------------------- #
def _vmem_capacity_bytes():
    """Best-effort per-core VMEM capacity; conservative (v7x) fallback."""
    try:
        info = pltpu.get_tpu_info()
        for attr in ("vmem_capacity_bytes", "vmem_size_bytes", "vmem_bytes"):
            v = getattr(info, attr, None)
            if v:
                return int(v)
    except Exception:
        pass
    return 64 * 1024 * 1024


def _vmem_bytes_estimate(lx_t, ly, q_ch, n_heads, c, cout, in_bytes, out_bytes):
    """Rough per-step VMEM model: double-buffered blocks + in-body temporaries."""
    blocks = 2 * in_bytes * (q_ch * lx_t                # x tile
                             + n_heads * ly * c         # K slab (all heads)
                             + n_heads * cout * ly      # V slab (all heads)
                             + n_heads * c * q_ch)      # wq
    blocks += 2 * out_bytes * cout * lx_t               # output tile
    temps = (4 * ly * lx_t                              # f32 logits / p
             + in_bytes * ly * lx_t                     # p cast for the PV dot
             + in_bytes * n_heads * c * lx_t            # q_all
             + 4 * 2 * cout * lx_t)                     # pv + acc (f32)
    return blocks + 2 * temps                           # headroom for overlap


def _pick_lx_tile(lx, batch, est_fn, budget):
    """Largest 128-multiple tile dividing Lx that fits the VMEM budget."""
    cands = [t for t in (1024, 512, 256, 128) if lx % t == 0]
    if not cands:
        return lx                       # small / odd Lx: single full-length tile
    lx_t = cands[-1]
    for t in cands:                     # largest first
        if est_fn(t) <= budget:
            lx_t = t
            break
    # Give megacore parts at least 2 parallel grid blocks on tiny batch*Lx.
    while batch * (lx // lx_t) < 2 and lx_t >= 512:
        lx_t //= 2
    return lx_t


# --------------------------------------------------------------------------- #
# Kernel
# --------------------------------------------------------------------------- #
def _attention1d_kernel(num_heads, head_dim, dot_dtype, approx_recip):
    """Grid = (batch, lx_tile); all heads reduced inside the body."""
    H, C = num_heads, head_dim

    def kernel(x_ref, wq_ref, k_ref, v_ref, o_ref):
        x_t = x_ref[0]                  # (q_ch, lx_t)   NCL query tile (lane = Lx)
        wq = wq_ref[...]                # (H*C, q_ch)    pre-scaled by 1/sqrt(C)

        # Q projection for all heads in one MXU dot; emit directly in dot dtype
        # (K = q_ch is tiny, accumulation precision is irrelevant).
        q_all = jnp.dot(wq, x_t, preferred_element_type=dot_dtype)   # (H*C, lx_t)

        acc = None
        for h in range(H):              # statically unrolled head reduction
            q_h = q_all[h * C:(h + 1) * C, :]        # (C, lx_t)
            k_h = k_ref[0, h]                        # (Ly, C)   host-projected K
            v_h = v_ref[0, h]                        # (Cout, Ly) host-projected V (+out fold)

            # logits with keys on the sublane axis -> canonical MXU dot,
            # softmax stats come out as (1, lx_t) row vectors.
            logits = jnp.dot(k_h, q_h, preferred_element_type=jnp.float32)  # (Ly, lx_t)
            m = jnp.max(logits, axis=0, keepdims=True)                      # (1, lx_t)
            p = jnp.exp(logits - m)                                         # (Ly, lx_t) f32
            denom = jnp.sum(p, axis=0, keepdims=True)                       # (1, lx_t)

            # Unnormalized PV on the MXU, then ONE small (Cout, lx_t) rescale.
            pv = jnp.dot(v_h, p.astype(dot_dtype),
                         preferred_element_type=jnp.float32)                # (Cout, lx_t)
            contrib = pv * pl.reciprocal(denom, approx=approx_recip)
            acc = contrib if acc is None else acc + contrib

        o_ref[0] = acc.astype(o_ref.dtype)           # lane-dense (Cout, lx_t) store

    return kernel


# --------------------------------------------------------------------------- #
# Wrapper
# --------------------------------------------------------------------------- #
@functools.partial(jax.jit, static_argnames=("num_heads", "compute_dtype"))
def attention1d_pallas(x_ncl, y_ncl, wq, wk, wv, wo, num_heads,
                       compute_dtype=jnp.float32):
    """x_ncl: (B, q_ch, Lx), y_ncl: (B, k_ch, Ly) -> (B, out_ch, Lx)  (NCL in/out)."""
    B, q_ch, Lx = x_ncl.shape
    _, k_ch, Ly = y_ncl.shape
    H = num_heads
    hc = wq.shape[0]
    C = hc // H                               # per-head dim == module out_channels
    Cout = wo.shape[0]
    inv_norm = 1.0 / math.sqrt(float(Cout))   # module: norm_const = out_channels ** 0.5

    f32 = jnp.float32
    hi = lax.Precision.HIGHEST

    # ---- host-side weight prep + hoisted K/V projections (tiny, once) -------
    wq_p = wq.astype(f32) * inv_norm                                   # (H*C, q_ch)
    wk_h = wk.astype(f32).reshape(H, C, k_ch)                          # (H, C, k_ch)
    wvo = jnp.einsum("ohc,hck->hok",
                     wo.astype(f32).reshape(Cout, H, C),
                     wv.astype(f32).reshape(H, C, k_ch),
                     precision=hi)                                     # (H, Cout, k_ch)
    y32 = y_ncl.astype(f32)
    k_all = jnp.einsum("hck,bkl->bhlc", wk_h, y32, precision=hi)       # (B, H, Ly, C)
    v_all = jnp.einsum("hok,bkl->bhol", wvo, y32, precision=hi)        # (B, H, Cout, Ly)

    x_c = x_ncl.astype(compute_dtype)          # stays NCL: lane-dense over Lx
    wq_c = wq_p.astype(compute_dtype)
    k_c = k_all.astype(compute_dtype)
    v_c = v_all.astype(compute_dtype)

    out_dtype = x_ncl.dtype
    in_bytes = jnp.dtype(compute_dtype).itemsize
    out_bytes = jnp.dtype(out_dtype).itemsize
    approx_recip = bool(jnp.dtype(compute_dtype) != jnp.dtype(jnp.float32))

    # ---- VMEM-model-driven tile & limit (v7x 64 MiB vs v5e/v6e 128 MiB) -----
    vmem_cap = _vmem_capacity_bytes()
    vmem_limit = max(32 * 1024 * 1024,
                     min(int(0.625 * vmem_cap), 96 * 1024 * 1024))
    tile_budget = int(0.75 * vmem_limit)

    def est(t):
        return _vmem_bytes_estimate(t, Ly, q_ch, H, C, Cout, in_bytes, out_bytes)

    lx_t = _pick_lx_tile(Lx, B, est, tile_budget)
    n_lx = Lx // lx_t

    # ---- advisory cost estimate ---------------------------------------------
    flops_per_step = (2 * hc * q_ch * lx_t
                      + H * (2 * Ly * C * lx_t + 2 * Cout * Ly * lx_t))
    flops = B * n_lx * flops_per_step
    bytes_accessed = B * n_lx * ((q_ch * lx_t + hc * q_ch
                                  + H * Ly * C + H * Cout * Ly) * in_bytes
                                 + Cout * lx_t * out_bytes)
    cost = pl.CostEstimate(flops=int(flops),
                           transcendentals=int(B * H * Lx * Ly),
                           bytes_accessed=int(bytes_accessed))

    out = pl.pallas_call(
        _attention1d_kernel(H, C, compute_dtype, approx_recip),
        out_shape=jax.ShapeDtypeStruct((B, Cout, Lx), out_dtype),
        grid_spec=pltpu.PrefetchScalarGridSpec(
            num_scalar_prefetch=0,
            grid=(B, n_lx),
            in_specs=[
                pl.BlockSpec((1, q_ch, lx_t), lambda b, i: (b, 0, i)),     # x (NCL tile)
                pl.BlockSpec((hc, q_ch), lambda b, i: (0, 0)),             # wq (all heads)
                pl.BlockSpec((1, H, Ly, C), lambda b, i: (b, 0, 0, 0)),    # K  (all heads)
                pl.BlockSpec((1, H, Cout, Ly), lambda b, i: (b, 0, 0, 0)), # V  (all heads)
            ],
            out_specs=pl.BlockSpec((1, Cout, lx_t), lambda b, i: (b, 0, i)),
        ),
        compiler_params=pltpu.CompilerParams(
            dimension_semantics=("parallel", "parallel"),
            vmem_limit_bytes=int(vmem_limit),
        ),
        cost_estimate=cost,
    )(x_c, wq_c, k_c, v_c)

    return out   # (B, out_ch, Lx) NCL — no output transpose


# --------------------------------------------------------------------------- #
# Pure-JAX reference mirroring the PyTorch forward exactly
# --------------------------------------------------------------------------- #
def attention1d_ref(x_ncl, y_ncl, wq, wk, wv, wo, num_heads):
    B, _, Lx = x_ncl.shape
    _, _, Ly = y_ncl.shape
    hc = wq.shape[0]
    C = hc // num_heads
    norm_const = float(wo.shape[0]) ** 0.5

    q = jnp.einsum("oi,bil->bol", wq, x_ncl).reshape(B, num_heads, C, Lx)
    k = jnp.einsum("oi,bil->bol", wk, y_ncl).reshape(B, num_heads, C, Ly)
    v = jnp.einsum("oi,bil->bol", wv, y_ncl).reshape(B, num_heads, C, Ly)
    qT = jnp.swapaxes(q, -1, -2)           # (B, H, Lx, C)
    vT = jnp.swapaxes(v, -1, -2)           # (B, H, Ly, C)
    logits = jnp.einsum("bnik,bnkj->bnij", qT, k) / norm_const
    probs = jax.nn.softmax(logits, axis=-1)
    out = jnp.einsum("bnik,bnkj->bnji", probs, vT)     # (B, H, C, Lx)
    out = out.reshape(B, hc, Lx)
    return jnp.einsum("oi,bil->bol", wo, out)


if __name__ == "__main__":
    def run_case(name, B, q_ch, k_ch, out_ch, H, Lx, Ly, compute_dtype, atol, rtol, key):
        hc = out_ch * H
        kx, ky, k1, k2, k3, k4 = jax.random.split(key, 6)
        x = jax.random.normal(kx, (B, q_ch, Lx), jnp.float32)    # NCL like PyTorch
        y = jax.random.normal(ky, (B, k_ch, Ly), jnp.float32)
        wq = jax.random.normal(k1, (hc, q_ch), jnp.float32) * 0.1
        wk = jax.random.normal(k2, (hc, k_ch), jnp.float32) * 0.1
        wv = jax.random.normal(k3, (hc, k_ch), jnp.float32) * 0.1
        wo = jax.random.normal(k4, (out_ch, hc), jnp.float32) * 0.1

        out = attention1d_pallas(x, y, wq, wk, wv, wo, num_heads=H,
                                 compute_dtype=compute_dtype)
        out = jax.block_until_ready(out)
        ref = attention1d_ref(x, y, wq, wk, wv, wo, H)

        assert out.shape == (B, out_ch, Lx), (name, out.shape)
        out_f32 = out.astype(jnp.float32)
        err = float(jnp.max(jnp.abs(out_f32 - ref)))
        assert jnp.allclose(out_f32, ref, atol=atol, rtol=rtol), (name, err)

    key = jax.random.PRNGKey(0)
    k_a, k_b = jax.random.split(key)

    # Tiny shapes matching the module defaults, exact f32 path.
    run_case("tiny_f32", B=2, q_ch=4, k_ch=6, out_ch=8, H=2, Lx=16, Ly=12,
             compute_dtype=jnp.float32, atol=1e-4, rtol=1e-4, key=k_a)
    # Same tiny shapes on the bf16 MXU path (f32 accumulation / softmax).
    run_case("tiny_bf16", B=2, q_ch=4, k_ch=6, out_ch=8, H=2, Lx=16, Ly=12,
             compute_dtype=jnp.bfloat16, atol=5e-3, rtol=5e-2, key=k_a)
    # Larger case exercising the Lx tiling + in-body head reduction (bf16 path).
    run_case("tiled_bf16", B=1, q_ch=16, k_ch=16, out_ch=64, H=2, Lx=1024, Ly=256,
             compute_dtype=jnp.bfloat16, atol=5e-3, rtol=5e-2, key=k_b)

    print("KERNEL_OK")
</pallas_src>

<mosaic_0001>
module attributes {stable_mosaic.version = 11 : i64} {
  func.func @kernel(%arg0: i32, %arg1: i32, %arg2: memref<1x4x16xf32, #tpu.memory_space<vmem>>, %arg3: memref<16x4xf32, #tpu.memory_space<vmem>>, %arg4: memref<1x2x12x8xf32, #tpu.memory_space<vmem>>, %arg5: memref<1x2x8x12xf32, #tpu.memory_space<vmem>>, %arg6: memref<1x8x16xf32, #tpu.memory_space<vmem>>) attributes {dimension_semantics = [#tpu.dimension_semantics<parallel>, #tpu.dimension_semantics<parallel>], iteration_bounds = array<i64: 2, 1>, scalar_prefetch = 0 : i64, scratch_operands = 0 : i64, tpu.core_type = #tpu.core_type<tc>, window_params = [{transform_indices = @transform_0, window_bounds = array<i64: 1, 4, 16>}, {pipeline_mode = #tpu.pipeline_mode<synchronous>, transform_indices = @transform_1, window_bounds = array<i64: 16, 4>}, {transform_indices = @transform_2, window_bounds = array<i64: 1, 2, 12, 8>}, {transform_indices = @transform_3, window_bounds = array<i64: 1, 2, 8, 12>}, {transform_indices = @transform_4, window_bounds = array<i64: 1, 8, 16>}]} {
    %c0 = arith.constant 0 : index
    %c0_0 = arith.constant 0 : index
    %c0_1 = arith.constant 0 : index
    %0 = vector.load %arg2[%c0, %c0_0, %c0_1] : memref<1x4x16xf32, #tpu.memory_space<vmem>>, vector<1x4x16xf32>
    %1 = vector.shape_cast %0 : vector<1x4x16xf32> to vector<4x16xf32>
    %c0_2 = arith.constant 0 : index
    %c0_3 = arith.constant 0 : index
    %2 = vector.load %arg3[%c0_2, %c0_3] : memref<16x4xf32, #tpu.memory_space<vmem>>, vector<16x4xf32>
    %cst = arith.constant dense<0.000000e+00> : vector<16x16xf32>
    %3 = tpu.matmul %2, %1, %cst {dimension_numbers = #tpu.dot_dimension_numbers<[1], [0], [0], [1], [0, 0, 1, 1], [], []>} : vector<16x4xf32>, vector<4x16xf32>, vector<16x16xf32> -> vector<16x16xf32>
    %4 = vector.extract_strided_slice %3 {offsets = [0, 0], sizes = [8, 16], strides = [1, 1]} : vector<16x16xf32> to vector<8x16xf32>
    %c0_4 = arith.constant 0 : index
    %c0_5 = arith.constant 0 : index
    %c0_6 = arith.constant 0 : index
    %c0_7 = arith.constant 0 : index
    %5 = vector.load %arg4[%c0_4, %c0_5, %c0_6, %c0_7] : memref<1x2x12x8xf32, #tpu.memory_space<vmem>>, vector<1x1x12x8xf32>
    %6 = vector.shape_cast %5 : vector<1x1x12x8xf32> to vector<12x8xf32>
    %c0_8 = arith.constant 0 : index
    %c0_9 = arith.constant 0 : index
    %c0_10 = arith.constant 0 : index
    %c0_11 = arith.constant 0 : index
    %7 = vector.load %arg5[%c0_8, %c0_9, %c0_10, %c0_11] : memref<1x2x8x12xf32, #tpu.memory_space<vmem>>, vector<1x1x8x12xf32>
    %8 = vector.shape_cast %7 : vector<1x1x8x12xf32> to vector<8x12xf32>
    %cst_12 = arith.constant dense<0.000000e+00> : vector<12x16xf32>
    %9 = tpu.matmul %6, %4, %cst_12 {dimension_numbers = #tpu.dot_dimension_numbers<[1], [0], [0], [1], [0, 0, 1, 1], [], []>} : vector<12x8xf32>, vector<8x16xf32>, vector<12x16xf32> -> vector<12x16xf32>
    %cst_13 = arith.constant dense<0xFF800000> : vector<16xf32>
    %10 = vector.multi_reduction <maximumf>, %9, %cst_13 [0] : vector<12x16xf32> to vector<16xf32>
    %11 = vector.shape_cast %10 : vector<16xf32> to vector<1x16xf32>
    %12 = vector.broadcast %11 : vector<1x16xf32> to vector<12x16xf32>
    %13 = arith.subf %9, %12 : vector<12x16xf32>
    %14 = math.exp %13 : vector<12x16xf32>
    %cst_14 = arith.constant dense<0.000000e+00> : vector<16xf32>
    %15 = vector.multi_reduction <add>, %14, %cst_14 [0] : vector<12x16xf32> to vector<16xf32>
    %16 = vector.shape_cast %15 : vector<16xf32> to vector<1x16xf32>
    %cst_15 = arith.constant dense<0.000000e+00> : vector<8x16xf32>
    %17 = tpu.matmul %8, %14, %cst_15 {dimension_numbers = #tpu.dot_dimension_numbers<[1], [0], [0], [1], [0, 0, 1, 1], [], []>} : vector<8x12xf32>, vector<12x16xf32>, vector<8x16xf32> -> vector<8x16xf32>
    %18 = tpu.reciprocal %16 : vector<1x16xf32> -> vector<1x16xf32>
    %19 = vector.broadcast %18 : vector<1x16xf32> to vector<8x16xf32>
    %20 = arith.mulf %17, %19 : vector<8x16xf32>
    %21 = vector.extract_strided_slice %3 {offsets = [8, 0], sizes = [8, 16], strides = [1, 1]} : vector<16x16xf32> to vector<8x16xf32>
    %c0_16 = arith.constant 0 : index
    %c1 = arith.constant 1 : index
    %c0_17 = arith.constant 0 : index
    %c0_18 = arith.constant 0 : index
    %22 = vector.load %arg4[%c0_16, %c1, %c0_17, %c0_18] : memref<1x2x12x8xf32, #tpu.memory_space<vmem>>, vector<1x1x12x8xf32>
    %23 = vector.shape_cast %22 : vector<1x1x12x8xf32> to vector<12x8xf32>
    %c0_19 = arith.constant 0 : index
    %c1_20 = arith.constant 1 : index
    %c0_21 = arith.constant 0 : index
    %c0_22 = arith.constant 0 : index
    %24 = vector.load %arg5[%c0_19, %c1_20, %c0_21, %c0_22] : memref<1x2x8x12xf32, #tpu.memory_space<vmem>>, vector<1x1x8x12xf32>
    %25 = vector.shape_cast %24 : vector<1x1x8x12xf32> to vector<8x12xf32>
    %cst_23 = arith.constant dense<0.000000e+00> : vector<12x16xf32>
    %26 = tpu.matmul %23, %21, %cst_23 {dimension_numbers = #tpu.dot_dimension_numbers<[1], [0], [0], [1], [0, 0, 1, 1], [], []>} : vector<12x8xf32>, vector<8x16xf32>, vector<12x16xf32> -> vector<12x16xf32>
    %cst_24 = arith.constant dense<0xFF800000> : vector<16xf32>
    %27 = vector.multi_reduction <maximumf>, %26, %cst_24 [0] : vector<12x16xf32> to vector<16xf32>
    %28 = vector.shape_cast %27 : vector<16xf32> to vector<1x16xf32>
    %29 = vector.broadcast %28 : vector<1x16xf32> to vector<12x16xf32>
    %30 = arith.subf %26, %29 : vector<12x16xf32>
    %31 = math.exp %30 : vector<12x16xf32>
    %cst_25 = arith.constant dense<0.000000e+00> : vector<16xf32>
    %32 = vector.multi_reduction <add>, %31, %cst_25 [0] : vector<12x16xf32> to vector<16xf32>
    %33 = vector.shape_cast %32 : vector<16xf32> to vector<1x16xf32>
    %cst_26 = arith.constant dense<0.000000e+00> : vector<8x16xf32>
    %34 = tpu.matmul %25, %31, %cst_26 {dimension_numbers = #tpu.dot_dimension_numbers<[1], [0], [0], [1], [0, 0, 1, 1], [], []>} : vector<8x12xf32>, vector<12x16xf32>, vector<8x16xf32> -> vector<8x16xf32>
    %35 = tpu.reciprocal %33 : vector<1x16xf32> -> vector<1x16xf32>
    %36 = vector.broadcast %35 : vector<1x16xf32> to vector<8x16xf32>
    %37 = arith.mulf %34, %36 : vector<8x16xf32>
    %38 = arith.addf %20, %37 : vector<8x16xf32>
    %c0_27 = arith.constant 0 : index
    %c0_28 = arith.constant 0 : index
    %c0_29 = arith.constant 0 : index
    %39 = vector.load %arg6[%c0_27, %c0_28, %c0_29] : memref<1x8x16xf32, #tpu.memory_space<vmem>>, vector<1x8x16xf32>
    %40 = vector.shape_cast %39 : vector<1x8x16xf32> to vector<8x16xf32>
    %41 = vector.shape_cast %38 : vector<8x16xf32> to vector<1x8x16xf32>
    tpu.vector_store %arg6[%c0_27, %c0_28, %c0_29], %41 {strides = array<i32>} : memref<1x8x16xf32, #tpu.memory_space<vmem>>, vector<1x8x16xf32>,
    return
  }
  func.func @transform_0(%arg0: i32, %arg1: i32) -> (i32, i32, i32) {
    %c0_i32 = arith.constant 0 : i32
    %c0_i32_0 = arith.constant 0 : i32
    return %arg0, %c0_i32, %arg1 : i32, i32, i32
  }
  func.func @transform_1(%arg0: i32, %arg1: i32) -> (i32, i32) {
    %c0_i32 = arith.constant 0 : i32
    %c0_i32_0 = arith.constant 0 : i32
    %c0_i32_1 = arith.constant 0 : i32
    return %c0_i32, %c0_i32_0 : i32, i32
  }
  func.func @transform_2(%arg0: i32, %arg1: i32) -> (i32, i32, i32, i32) {
    %c0_i32 = arith.constant 0 : i32
    %c0_i32_0 = arith.constant 0 : i32
    %c0_i32_1 = arith.constant 0 : i32
    %c0_i32_2 = arith.constant 0 : i32
    return %arg0, %c0_i32, %c0_i32_0, %c0_i32_1 : i32, i32, i32, i32
  }
  func.func @transform_3(%arg0: i32, %arg1: i32) -> (i32, i32, i32, i32) {
    %c0_i32 = arith.constant 0 : i32
    %c0_i32_0 = arith.constant 0 : i32
    %c0_i32_1 = arith.constant 0 : i32
    %c0_i32_2 = arith.constant 0 : i32
    return %arg0, %c0_i32, %c0_i32_0, %c0_i32_1 : i32, i32, i32, i32
  }
  func.func @transform_4(%arg0: i32, %arg1: i32) -> (i32, i32, i32) {
    %c0_i32 = arith.constant 0 : i32
    %c0_i32_0 = arith.constant 0 : i32
    return %arg0, %c0_i32, %arg1 : i32, i32, i32
  }
}

</mosaic_0001>

<llo_original>
// kernel: attention1d_pallas.1
$region0: #{attention1d_pallas.1}
  #allocation0 [shape = 'u32[]', space=smem, size = 0x4, offset = 0x4, fixed_abs, tag = 'smem constant byte address 0x4 - core index']
  #allocation1 [shape = 'u32[144,128]{1,0:T(1,128)}', space=vmem, size = 0x12000, scoped, tag = 'internal scratch']
  %s0 = inlined_call_operand.vmem [shape: f32[2,4,16], index: 0, kind: input, shape index: {}]
  %s1 = inlined_call_operand.vmem [shape: f32[16,4], index: 1, kind: input, shape index: {}]
  %s2 = inlined_call_operand.vmem [shape: f32[2,2,12,8], index: 2, kind: input, shape index: {}]
  %s3 = inlined_call_operand.vmem [shape: f32[2,2,8,12], index: 3, kind: input, shape index: {}]
  %s4 = inlined_call_operand.hbm [shape: f32[2,8,16], index: 4, kind: output, shape index: {}]
  %s5 = sld [smem:[#allocation0]]
  $region49: #{attention1d_pallas.1} parent=0
    _
  %s7 = ssub.s32 1, %s5
  %s8 = scalar_select 0, %s7, %s5
  $region1: #{attention1d_pallas.1} parent=0
    #allocation2 [shape = 'u8[8192]{0}', space=vmem, size = 0x2000, scoped, tag = 'output window, operand 0']
    #allocation3 [shape = 's32[2]{0}', space=sflag, size = 0x8, scoped, tag = 'scoped memory for attention1d_pallas.1']
    %9 = vsyncpa [#allocation3], 0
    %s10 = scalar_lea.sflag [#allocation3], 1
    %11 = vsyncpa %s10, 0
    loop: start=0, step=1, limit=4
    $region2: #{attention1d_pallas.1} parent=1 // loop_pre_header
      _
    $region3: #{attention1d_pallas.1} parent=1 // loop_header
      %s13 = sphi 0, %s17
      %p14 = scmp.ge.s32.totalorder %s13, 4
      %s20 = sphi 0, %s32
      %s21 = sphi 0, %s28
      %s22 = sphi 0, %s20
      %s23 = sphi 0, %s21
      %s24 = sphi 0, %s22
      %s25 = sphi 0, %s23
      %s37 = sphi 0, %s39
      %s40 = sphi 0, %s37
      %s41 = sphi 0, %s40
      %s57 = sphi 0, %s41
      %s61 = sphi 0, %s61
      %s63 = sphi 0, %s61
      %s64 = sphi 0, %s63
      %s78 = sphi 0, %s64
      %s84 = sphi 0, %s86
      %s87 = sphi 0, %s84
      %s88 = sphi 0, %s87
      %s104 = sphi 0, %s88
      %s110 = sphi 0, %s112
      %s113 = sphi 0, %s110
      %s114 = sphi 0, %s113
      %s130 = sphi 0, %s114
      %s138 = sphi 0, %s140
      %s141 = sphi 0, %s138
      %s142 = sphi 0, %s141
      %s158 = sphi 0, %s142
    $region4: #{attention1d_pallas.1} parent=1 // loop_header_branch
      %16 = sbr.rel (%p14) target = $region8
    $region5: #{attention1d_pallas.1} parent=1 // loop_body
      %s18 = ssub.s32 %s13, 1
      %s19 = ssub.s32 %s13, 2
      %s26 = sadd.s32 1, %s21
      %p27 = scmp.ge.s32.totalorder %s26, 1
      %s28 = scalar_select %p27, 0, %s26
      %s29 = sadd.s32 1, %s20
      %s30 = scalar_select %p27, %s29, %s20
      %p31 = scmp.ge.s32.totalorder %s30, 2
      %s32 = scalar_select %p31, 0, %s30
      %s33 = ssub.s32 %s20, %s32
      %s34 = ssub.s32 %s21, %s28
      %s35 = sor.u32 %s33, %s34
      %p36 = scmp.eq.s32.totalorder %s35, 0
      %s38 = sadd.s32 %s37, 1
      %s39 = scalar_select %p36, %s37, %s38
      %p42 = pneg %p36
      %p43 = scmp.eq.s32.totalorder %s13, 1
      %p44 = por %p42, %p43
      %p45 = scmp.ne.s32.totalorder %s37, %s40
      %p46 = scmp.eq.s32.totalorder %s13, 0
      %p47 = por %p45, %p46
      %p48 = scmp.ne.s32.totalorder %s37, %s40
      %p49 = scmp.eq.s32.totalorder %s18, 1
      %p50 = por %p48, %p49
      %p51 = scmp.ne.s32.totalorder %s40, %s41
      %p52 = scmp.eq.s32.totalorder %s18, 0
      %p53 = por %p51, %p52
      %p54 = scmp.ne.s32.totalorder %s40, %s41
      %p55 = scmp.eq.s32.totalorder %s19, 1
      %p56 = por %p54, %p55
      %p58 = scmp.ne.s32.totalorder %s41, %s57
      %p59 = scmp.eq.s32.totalorder %s19, 0
      %p60 = por %p58, %p59
      %s62 = sadd.s32 %s61, 1
      %p65 = scmp.eq.s32.totalorder %s13, 1
      %p66 = scmp.ne.s32.totalorder %s61, %s63
      %p67 = scmp.eq.s32.totalorder %s13, 0
      %p68 = por %p66, %p67
      %p69 = scmp.ne.s32.totalorder %s61, %s63
      %p70 = scmp.eq.s32.totalorder %s18, 1
      %p71 = por %p69, %p70
      %p72 = scmp.ne.s32.totalorder %s63, %s64
      %p73 = scmp.eq.s32.totalorder %s18, 0
      %p74 = por %p72, %p73
      %p75 = scmp.ne.s32.totalorder %s63, %s64
      %p76 = scmp.eq.s32.totalorder %s19, 1
      %p77 = por %p75, %p76
      %p79 = scmp.ne.s32.totalorder %s64, %s78
      %p80 = scmp.eq.s32.totalorder %s19, 0
      %p81 = por %p79, %p80
      %s82 = ssub.s32 %s20, %s32
      %p83 = scmp.eq.s32.totalorder %s82, 0
      %s85 = sadd.s32 %s84, 1
      %s86 = scalar_select %p83, %s84, %s85
      %p89 = pneg %p83
      %p90 = scmp.eq.s32.totalorder %s13, 1
      %p91 = por %p89, %p90
      %p92 = scmp.ne.s32.totalorder %s84, %s87
      %p93 = scmp.eq.s32.totalorder %s13, 0
      %p94 = por %p92, %p93
      %p95 = scmp.ne.s32.totalorder %s84, %s87
      %p96 = scmp.eq.s32.totalorder %s18, 1
      %p97 = por %p95, %p96
      %p98 = scmp.ne.s32.totalorder %s87, %s88
      %p99 = scmp.eq.s32.totalorder %s18, 0
      %p100 = por %p98, %p99
      %p101 = scmp.ne.s32.totalorder %s87, %s88
      %p102 = scmp.eq.s32.totalorder %s19, 1
      %p103 = por %p101, %p102
      %p105 = scmp.ne.s32.totalorder %s88, %s104
      %p106 = scmp.eq.s32.totalorder %s19, 0
      %p107 = por %p105, %p106
      %s108 = ssub.s32 %s20, %s32
      %p109 = scmp.eq.s32.totalorder %s108, 0
      %s111 = sadd.s32 %s110, 1
      %s112 = scalar_select %p109, %s110, %s111
      %p115 = pneg %p109
      %p116 = scmp.eq.s32.totalorder %s13, 1
      %p117 = por %p115, %p116
      %p118 = scmp.ne.s32.totalorder %s110, %s113
      %p119 = scmp.eq.s32.totalorder %s13, 0
      %p120 = por %p118, %p119
      %p121 = scmp.ne.s32.totalorder %s110, %s113
      %p122 = scmp.eq.s32.totalorder %s18, 1
      %p123 = por %p121, %p122
      %p124 = scmp.ne.s32.totalorder %s113, %s114
      %p125 = scmp.eq.s32.totalorder %s18, 0
      %p126 = por %p124, %p125
      %p127 = scmp.ne.s32.totalorder %s113, %s114
      %p128 = scmp.eq.s32.totalorder %s19, 1
      %p129 = por %p127, %p128
      %p131 = scmp.ne.s32.totalorder %s114, %s130
      %p132 = scmp.eq.s32.totalorder %s19, 0
      %p133 = por %p131, %p132
      %s134 = ssub.s32 %s20, %s32
      %s135 = ssub.s32 %s21, %s28
      %s136 = sor.u32 %s134, %s135
      %p137 = scmp.eq.s32.totalorder %s136, 0
      %s139 = sadd.s32 %s138, 1
      %s140 = scalar_select %p137, %s138, %s139
      %p143 = pneg %p137
      %p144 = scmp.eq.s32.totalorder %s13, 1
      %p145 = por %p143, %p144
      %p146 = scmp.ne.s32.totalorder %s138, %s141
      %p147 = scmp.eq.s32.totalorder %s13, 0
      %p148 = por %p146, %p147
      %p149 = scmp.ne.s32.totalorder %s138, %s141
      %p150 = scmp.eq.s32.totalorder %s18, 1
      %p151 = por %p149, %p150
      %p152 = scmp.ne.s32.totalorder %s141, %s142
      %p153 = scmp.eq.s32.totalorder %s18, 0
      %p154 = por %p152, %p153
      %p155 = scmp.ne.s32.totalorder %s141, %s142
      %p156 = scmp.eq.s32.totalorder %s19, 1
      %p157 = por %p155, %p156
      %p159 = scmp.ne.s32.totalorder %s142, %s158
      %p160 = scmp.eq.s32.totalorder %s19, 0
      %p161 = por %p159, %p160
      %p162 = scmp.le.s32.totalorder 1, %s13
      %p163 = scmp.lt.s32.totalorder %s13, 3
      %p164 = pnand %p162, %p163
      %p165 = pneg %p164
      // Predicated region
      $region9: #{attention1d_pallas.1} parent=5 // pred_check
        _
      $region10: #{attention1d_pallas.1} parent=5 // pred_check_branch
        %167 = sbr.rel (%p164) target = $region12
      $region11: #{attention1d_pallas.1} parent=5 // pred_region
        %s168 = ssub.s32 %s13, 1
        // Predicated region
        $region13: #{attention1d_pallas.1} parent=11 // pred_check
          %p169 = pneg %p74
        $region14: #{attention1d_pallas.1} parent=11 // pred_check_branch
          %171 = sbr.rel (%p169) target = $region16
        $region15: #{attention1d_pallas.1} parent=11 // pred_region
          _
        $region16: #{attention1d_pallas.1} parent=11 // pred_fallthru
          _
      $region12: #{attention1d_pallas.1} parent=5 // pred_fallthru
        _
      %p172 = scmp.lt.s32.totalorder %s13, 2
      // Predicated region
      $region17: #{attention1d_pallas.1} parent=5 // pred_check
        %p173 = pneg %p172
      $region18: #{attention1d_pallas.1} parent=5 // pred_check_branch
        %175 = sbr.rel (%p173) target = $region20
      $region19: #{attention1d_pallas.1} parent=5 // pred_region
        // Predicated region
        $region21: #{attention1d_pallas.1} parent=19 // pred_check
          %p176 = pneg %p47
        $region22: #{attention1d_pallas.1} parent=19 // pred_check_branch
          %178 = sbr.rel (%p176) target = $region24
        $region23: #{attention1d_pallas.1} parent=19 // pred_region
          %p179 = scmp.lt.s32.totalorder %s20, 1
          %s180 = scalar_select %p179, %s20, 1
          %p181 = scmp.lt.s32.totalorder %s21, 0
          %s182 = scalar_select %p181, %s21, 0
          %s183 = sadd.s32 %s182, %s180
          %s184 = smul.addr %s183, 4
          %s185 = scalar_lea.vmem %s0, %s184
        $region24: #{attention1d_pallas.1} parent=19 // pred_fallthru
          _
        // Predicated region
        $region25: #{attention1d_pallas.1} parent=19 // pred_check
          %p186 = pneg %p94
        $region26: #{attention1d_pallas.1} parent=19 // pred_check_branch
          %188 = sbr.rel (%p186) target = $region28
        $region27: #{attention1d_pallas.1} parent=19 // pred_region
          %p189 = scmp.lt.s32.totalorder %s20, 1
          %s190 = scalar_select %p189, %s20, 1
          %s191 = smul.addr %s190, 4
          %s192 = smul.addr %s191, 8
          %s193 = scalar_lea.vmem %s2, %s192
        $region28: #{attention1d_pallas.1} parent=19 // pred_fallthru
          _
        // Predicated region
        $region29: #{attention1d_pallas.1} parent=19 // pred_check
          %p194 = pneg %p120
        $region30: #{attention1d_pallas.1} parent=19 // pred_check_branch
          %196 = sbr.rel (%p194) target = $region32
        $region31: #{attention1d_pallas.1} parent=19 // pred_region
          %p197 = scmp.lt.s32.totalorder %s20, 1
          %s198 = scalar_select %p197, %s20, 1
          %s199 = smul.addr %s198, 2
          %s200 = smul.addr %s199, 8
          %s201 = scalar_lea.vmem %s3, %s200
        $region32: #{attention1d_pallas.1} parent=19 // pred_fallthru
          _
      $region20: #{attention1d_pallas.1} parent=5 // pred_fallthru
        _
      %p202 = scmp.le.s32.totalorder 1, %s13
      %p203 = scmp.lt.s32.totalorder %s13, 3
      %p204 = pnand %p202, %p203
      %p205 = pneg %p204
      // Predicated region
      $region33: #{attention1d_pallas.1} parent=5 // pred_check
        _
      $region34: #{attention1d_pallas.1} parent=5 // pred_check_branch
        %207 = sbr.rel (%p204) target = $region36
      $region35: #{attention1d_pallas.1} parent=5 // pred_region
        %s208 = ssub.s32 %s13, 1
        %p209 = scmp.lt.s32.totalorder %s22, 1
        %s210 = scalar_select %p209, %s22, 1
        %p211 = scmp.lt.s32.totalorder %s23, 0
        %s212 = scalar_select %p211, %s23, 0
        %s213 = sadd.s32 %s212, %s210
        %s214 = smul.addr %s213, 4
        %s215 = scalar_lea.vmem %s0, %s214
        %p216 = pneg %p53
        %p217 = pneg %p50
        %p218 = pneg %p74
        %p219 = pneg %p71
        %p220 = scmp.lt.s32.totalorder %s22, 1
        %s221 = scalar_select %p220, %s22, 1
        %s222 = smul.addr %s221, 4
        %s223 = smul.addr %s222, 8
        %s224 = scalar_lea.vmem %s2, %s223
        %p225 = pneg %p100
        %p226 = pneg %p97
        %p227 = scmp.lt.s32.totalorder %s22, 1
        %s228 = scalar_select %p227, %s22, 1
        %s229 = smul.addr %s228, 2
        %s230 = smul.addr %s229, 8
        %s231 = scalar_lea.vmem %s3, %s230
        %p232 = pneg %p126
        %p233 = pneg %p123
        %p234 = pneg %p154
        %p235 = pneg %p151
        %s236 = sand.u32 %s141, 1
        %s237 = scalar_lea.sflag [#allocation3], %s236
        %s238 = sand.u32 %s141, 1
        %s239 = smul.addr %s238, 8
        %s240 = scalar_lea.vmem [#allocation2], %s239
        %p241 = scmp.lt.s32.totalorder %s22, 1
        %s242 = scalar_select %p241, %s22, 1
        %p243 = scmp.lt.s32.totalorder %s23, 0
        %s244 = scalar_select %p243, %s23, 0
        %s245 = sadd.s32 %s244, %s242
        %s246 = smul.addr %s245, 4
        %s247 = scalar_lea.vmem %s0, %s246
        %p248 = scmp.lt.s32.totalorder %s22, 1
        %s249 = scalar_select %p248, %s22, 1
        %s250 = smul.addr %s249, 4
        %s251 = smul.addr %s250, 8
        %s252 = scalar_lea.vmem %s2, %s251
        %p253 = scmp.lt.s32.totalorder %s22, 1
        %s254 = scalar_select %p253, %s22, 1
        %s255 = smul.addr %s254, 2
        %s256 = smul.addr %s255, 8
        %s257 = scalar_lea.vmem %s3, %s256
        %v258 = vld [vmem:[%s247] sm:$0xf]
        %v259 = vld [vmem:[%s1] sm:$0xff]
        %v260 = vld [vmem:[%s1 + $0x8] sm:$0xff]
        %vm261 = vcmask 31744
        %v263 = vsel %vm261, %v259, 0
        %v266 = vsel %vm261, %v260, 0
        %vm268 = vcmask 1043456
        %v270 = vsel %vm268, %v258, 0
        %272 = vmatprep.subr.mxu0 0.0
        %273 = vmatpush1.msra.mxu0 %v270
        %274 = vmatprep.subr.mxu0 0.0
        %275 = vmatpush1.msra.mxu0 0.0
        %276 = vmatprep.subr.mxu0 0.0
        %277 = vmatpush1.msra.mxu0 0.0
        %278 = vmatprep.subr.mxu0 0.0
        %279 = vmatpush1.msra.mxu0 0.0
        %280 = vmatprep.subr.mxu0 0.0
        %281 = vmatpush1.msra.mxu0 0.0
        %282 = vmatprep.subr.mxu0 0.0
        %283 = vmatpush1.msra.mxu0 0.0
        %284 = vmatprep.subr.mxu0 0.0
        %285 = vmatpush1.msra.mxu0 0.0
        %286 = vmatprep.subr.mxu0 0.0
        %287 = vmatpush1.msra.mxu0 0.0
        %288 = vmatprep.subr.mxu0 0.0
        %289 = vmatpush1.msra.mxu0 0.0
        %290 = vmatprep.subr.mxu0 0.0
        %291 = vmatpush1.msra.mxu0 0.0
        %292 = vmatprep.subr.mxu0 0.0
        %293 = vmatpush1.msra.mxu0 0.0
        %294 = vmatprep.subr.mxu0 0.0
        %295 = vmatpush1.msra.mxu0 0.0
        %296 = vmatprep.subr.mxu0 0.0
        %297 = vmatpush1.msra.mxu0 0.0
        %298 = vmatprep.subr.mxu0 0.0
        %299 = vmatpush1.msra.mxu0 0.0
        %300 = vmatprep.subr.mxu0 0.0
        %301 = vmatpush1.msra.mxu0 0.0
        %302 = vmatprep.subr.mxu0 0.0
        %303 = vmatpush1.msra.mxu0 0.0
        %304 = vmatprep.subr.mxu0 0.0
        %305 = vmatpush1.msra.mxu0 0.0
        %306 = vmatprep.subr.mxu0 0.0
        %307 = vmatpush1.msra.mxu0 0.0
        %308 = vmatprep.subr.mxu0 0.0
        %309 = vmatpush1.msra.mxu0 0.0
        %310 = vmatprep.subr.mxu0 0.0
        %311 = vmatpush1.msra.mxu0 0.0
        %312 = vmatprep.subr.mxu0 0.0
        %313 = vmatpush1.msra.mxu0 0.0
        %314 = vmatprep.subr.mxu0 0.0
        %315 = vmatpush1.msra.mxu0 0.0
        %316 = vmatprep.subr.mxu0 0.0
        %317 = vmatpush1.msra.mxu0 0.0
        %318 = vmatprep.subr.mxu0 0.0
        %319 = vmatpush1.msra.mxu0 0.0
        %320 = vmatprep.subr.mxu0 0.0
        %321 = vmatpush1.msra.mxu0 0.0
        %322 = vmatprep.subr.mxu0 0.0
        %323 = vmatpush1.msra.mxu0 0.0
        %324 = vmatprep.subr.mxu0 0.0
        %325 = vmatpush1.msra.mxu0 0.0
        %326 = vmatprep.subr.mxu0 0.0
        %327 = vmatpush1.msra.mxu0 0.0
        %328 = vmatprep.subr.mxu0 0.0
        %329 = vmatpush1.msra.mxu0 0.0
        %330 = vmatprep.subr.mxu0 0.0
        %331 = vmatpush1.msra.mxu0 0.0
        %332 = vmatprep.subr.mxu0 0.0
        %333 = vmatpush1.msra.mxu0 0.0
        %334 = vmatprep.subr.mxu0 0.0
        %335 = vmatpush1.msra.mxu0 0.0
        %336 = vmatprep.mubr.f32.mxu0 0.0
        %337 = vmatmul.mubr.f32.gmra.mrb[0].mxu0 %v263
        %v338 = vpop.f32.mrb[0].mxu0
        %v339 = vadd.f32 0.0, %v338
        %v340 = vpop.f32.mrb[0].mxu0
        %341 = vmatprep.mubr.f32.mxu0 0.0
        %342 = vmatmul.mubr.f32.gmra.mrb[0].mxu0 %v266
        %v343 = vpop.f32.mrb[0].mxu0
        %v344 = vadd.f32 0.0, %v343
        %v345 = vpop.f32.mrb[0].mxu0
        %346 = vdwg.mxu0
        %v347 = vld [vmem:[%s252] sm:$0xff]
        %v348 = vld [vmem:[%s252 + $0x8] sm:$0xf]
        %v349 = vld [vmem:[%s257] sm:$0xff]
        %vm350 = vcmask 64512
        %v352 = vsel %vm350, %v347, 0
        %v355 = vsel %vm350, %v348, 0
        %357 = vmatprep.subr.mxu0 0.0
        %358 = vmatpush1.msra.mxu0 %v339
        %359 = vmatprep.subr.mxu0 0.0
        %360 = vmatpush1.msra.mxu0 0.0
        %361 = vmatprep.subr.mxu0 0.0
        %362 = vmatpush1.msra.mxu0 0.0
        %363 = vmatprep.subr.mxu0 0.0
        %364 = vmatpush1.msra.mxu0 0.0
        %365 = vmatprep.subr.mxu0 0.0
        %366 = vmatpush1.msra.mxu0 0.0
        %367 = vmatprep.subr.mxu0 0.0
        %368 = vmatpush1.msra.mxu0 0.0
        %369 = vmatprep.subr.mxu0 0.0
        %370 = vmatpush1.msra.mxu0 0.0
        %371 = vmatprep.subr.mxu0 0.0
        %372 = vmatpush1.msra.mxu0 0.0
        %373 = vmatprep.subr.mxu0 0.0
        %374 = vmatpush1.msra.mxu0 0.0
        %375 = vmatprep.subr.mxu0 0.0
        %376 = vmatpush1.msra.mxu0 0.0
        %377 = vmatprep.subr.mxu0 0.0
        %378 = vmatpush1.msra.mxu0 0.0
        %379 = vmatprep.subr.mxu0 0.0
        %380 = vmatpush1.msra.mxu0 0.0
        %381 = vmatprep.subr.mxu0 0.0
        %382 = vmatpush1.msra.mxu0 0.0
        %383 = vmatprep.subr.mxu0 0.0
        %384 = vmatpush1.msra.mxu0 0.0
        %385 = vmatprep.subr.mxu0 0.0
        %386 = vmatpush1.msra.mxu0 0.0
        %387 = vmatprep.subr.mxu0 0.0
        %388 = vmatpush1.msra.mxu0 0.0
        %389 = vmatprep.subr.mxu0 0.0
        %390 = vmatpush1.msra.mxu0 0.0
        %391 = vmatprep.subr.mxu0 0.0
        %392 = vmatpush1.msra.mxu0 0.0
        %393 = vmatprep.subr.mxu0 0.0
        %394 = vmatpush1.msra.mxu0 0.0
        %395 = vmatprep.subr.mxu0 0.0
        %396 = vmatpush1.msra.mxu0 0.0
        %397 = vmatprep.subr.mxu0 0.0
        %398 = vmatpush1.msra.mxu0 0.0
        %399 = vmatprep.subr.mxu0 0.0
        %400 = vmatpush1.msra.mxu0 0.0
        %401 = vmatprep.subr.mxu0 0.0
        %402 = vmatpush1.msra.mxu0 0.0
        %403 = vmatprep.subr.mxu0 0.0
        %404 = vmatpush1.msra.mxu0 0.0
        %405 = vmatprep.subr.mxu0 0.0
        %406 = vmatpush1.msra.mxu0 0.0
        %407 = vmatprep.subr.mxu0 0.0
        %408 = vmatpush1.msra.mxu0 0.0
        %409 = vmatprep.subr.mxu0 0.0
        %410 = vmatpush1.msra.mxu0 0.0
        %411 = vmatprep.subr.mxu0 0.0
        %412 = vmatpush1.msra.mxu0 0.0
        %413 = vmatprep.subr.mxu0 0.0
        %414 = vmatpush1.msra.mxu0 0.0
        %415 = vmatprep.subr.mxu0 0.0
        %416 = vmatpush1.msra.mxu0 0.0
        %417 = vmatprep.subr.mxu0 0.0
        %418 = vmatpush1.msra.mxu0 0.0
        %419 = vmatprep.subr.mxu0 0.0
        %420 = vmatpush1.msra.mxu0 0.0
        %421 = vmatprep.mubr.f32.mxu0 0.0
        %422 = vmatmul.mubr.f32.gmra.mrb[0].mxu0 %v352
        %v423 = vpop.f32.mrb[0].mxu0
        %v424 = vadd.f32 0.0, %v423
        %v425 = vpop.f32.mrb[0].mxu0
        %426 = vmatprep.mubr.f32.mxu0 0.0
        %427 = vmatmul.mubr.f32.gmra.mrb[0].mxu0 %v355
        %v428 = vpop.f32.mrb[0].mxu0
        %v429 = vadd.f32 0.0, %v428
        %v430 = vpop.f32.mrb[0].mxu0
        %431 = vdwg.mxu0
        %vm432 = vcmask 130048
        %v433 = vsel %vm432, %v424, -inf
        %vm434 = vcmask 125952
        %v435 = vsel %vm434, %v429, -inf
        %v436 = vmax.f32 %v433, %v435
        %v437 = vrot.slane %v436, 4
        %v438 = vmax.f32 %v436, %v437
        %v439 = vrot.slane %v438, 2
        %v440 = vmax.f32 %v438, %v439
        %v441 = vrot.slane %v440, 1
        %v442 = vmax.f32 %v440, %v441
        %v443 = vsub.f32 %v424, %v442
        %v444 = vsub.f32 %v429, %v442
        %v445 = vmul.f32 %v443, 1.442695
        %v446 = vpow.pop %v445
        %v447 = vmul.f32 %v444, 1.442695
        %v448 = vpow.pop %v447
        %v449 = vsel %vm432, %v446, 0.0
        %v450 = vsel %vm434, %v448, 0.0
        %v451 = vadd.f32 %v449, %v450
        %v452 = vrot.slane %v451, 4
        %v453 = vadd.f32 %v451, %v452
        %v454 = vrot.slane %v453, 2
        %v455 = vadd.f32 %v453, %v454
        %v456 = vrot.slane %v455, 1
        %v457 = vadd.f32 %v455, %v456
        %vm458 = vcmask 97280
        %v460 = vsel %vm458, %v349, 0
        %v463 = vsel %vm268, %v448, 0
        %465 = vmatprep.subr.mxu0 0.0
        %466 = vmatpush1.msra.mxu0 %v446
        %467 = vmatprep.subr.mxu0 0.0
        %468 = vmatpush1.msra.mxu0 %v463
        %469 = vmatprep.subr.mxu0 0.0
        %470 = vmatpush1.msra.mxu0 0.0
        %471 = vmatprep.subr.mxu0 0.0
        %472 = vmatpush1.msra.mxu0 0.0
        %473 = vmatprep.subr.mxu0 0.0
        %474 = vmatpush1.msra.mxu0 0.0
        %475 = vmatprep.subr.mxu0 0.0
        %476 = vmatpush1.msra.mxu0 0.0
        %477 = vmatprep.subr.mxu0 0.0
        %478 = vmatpush1.msra.mxu0 0.0
        %479 = vmatprep.subr.mxu0 0.0
        %480 = vmatpush1.msra.mxu0 0.0
        %481 = vmatprep.subr.mxu0 0.0
        %482 = vmatpush1.msra.mxu0 0.0
        %483 = vmatprep.subr.mxu0 0.0
        %484 = vmatpush1.msra.mxu0 0.0
        %485 = vmatprep.subr.mxu0 0.0
        %486 = vmatpush1.msra.mxu0 0.0
        %487 = vmatprep.subr.mxu0 0.0
        %488 = vmatpush1.msra.mxu0 0.0
        %489 = vmatprep.subr.mxu0 0.0
        %490 = vmatpush1.msra.mxu0 0.0
        %491 = vmatprep.subr.mxu0 0.0
        %492 = vmatpush1.msra.mxu0 0.0
        %493 = vmatprep.subr.mxu0 0.0
        %494 = vmatpush1.msra.mxu0 0.0
        %495 = vmatprep.subr.mxu0 0.0
        %496 = vmatpush1.msra.mxu0 0.0
        %497 = vmatprep.subr.mxu0 0.0
        %498 = vmatpush1.msra.mxu0 0.0
        %499 = vmatprep.subr.mxu0 0.0
        %500 = vmatpush1.msra.mxu0 0.0
        %501 = vmatprep.subr.mxu0 0.0
        %502 = vmatpush1.msra.mxu0 0.0
        %503 = vmatprep.subr.mxu0 0.0
        %504 = vmatpush1.msra.mxu0 0.0
        %505 = vmatprep.subr.mxu0 0.0
        %506 = vmatpush1.msra.mxu0 0.0
        %507 = vmatprep.subr.mxu0 0.0
        %508 = vmatpush1.msra.mxu0 0.0
        %509 = vmatprep.subr.mxu0 0.0
        %510 = vmatpush1.msra.mxu0 0.0
        %511 = vmatprep.subr.mxu0 0.0
        %512 = vmatpush1.msra.mxu0 0.0
        %513 = vmatprep.subr.mxu0 0.0
        %514 = vmatpush1.msra.mxu0 0.0
        %515 = vmatprep.subr.mxu0 0.0
        %516 = vmatpush1.msra.mxu0 0.0
        %517 = vmatprep.subr.mxu0 0.0
        %518 = vmatpush1.msra.mxu0 0.0
        %519 = vmatprep.subr.mxu0 0.0
        %520 = vmatpush1.msra.mxu0 0.0
        %521 = vmatprep.subr.mxu0 0.0
        %522 = vmatpush1.msra.mxu0 0.0
        %523 = vmatprep.subr.mxu0 0.0
        %524 = vmatpush1.msra.mxu0 0.0
        %525 = vmatprep.subr.mxu0 0.0
        %526 = vmatpush1.msra.mxu0 0.0
        %527 = vmatprep.subr.mxu0 0.0
        %528 = vmatpush1.msra.mxu0 0.0
        %529 = vmatprep.mubr.f32.mxu0 0.0
        %530 = vmatmul.mubr.f32.gmra.mrb[0].mxu0 %v460
        %v531 = vpop.f32.mrb[0].mxu0
        %v532 = vadd.f32 0.0, %v531
        %v533 = vpop.f32.mrb[0].mxu0
        %534 = vdwg.mxu0
        %v535 = vrcp.pop %v457
        %v536 = vmul.f32 %v532, %v535
        %s537 = scalar_lea.vmem %s252, 16
        %v538 = vld [vmem:[%s537] sm:$0xff]
        %v539 = vld [vmem:[%s537 + $0x8] sm:$0xf]
        %s540 = scalar_lea.vmem %s257, 8
        %v541 = vld [vmem:[%s540] sm:$0xff]
        %v543 = vsel %vm350, %v538, 0
        %v546 = vsel %vm350, %v539, 0
        %548 = vmatprep.subr.mxu0 0.0
        %549 = vmatpush1.msra.mxu0 %v344
        %550 = vmatprep.subr.mxu0 0.0
        %551 = vmatpush1.msra.mxu0 0.0
        %552 = vmatprep.subr.mxu0 0.0
        %553 = vmatpush1.msra.mxu0 0.0
        %554 = vmatprep.subr.mxu0 0.0
        %555 = vmatpush1.msra.mxu0 0.0
        %556 = vmatprep.subr.mxu0 0.0
        %557 = vmatpush1.msra.mxu0 0.0
        %558 = vmatprep.subr.mxu0 0.0
        %559 = vmatpush1.msra.mxu0 0.0
        %560 = vmatprep.subr.mxu0 0.0
        %561 = vmatpush1.msra.mxu0 0.0
        %562 = vmatprep.subr.mxu0 0.0
        %563 = vmatpush1.msra.mxu0 0.0
        %564 = vmatprep.subr.mxu0 0.0
        %565 = vmatpush1.msra.mxu0 0.0
        %566 = vmatprep.subr.mxu0 0.0
        %567 = vmatpush1.msra.mxu0 0.0
        %568 = vmatprep.subr.mxu0 0.0
        %569 = vmatpush1.msra.mxu0 0.0
        %570 = vmatprep.subr.mxu0 0.0
        %571 = vmatpush1.msra.mxu0 0.0
        %572 = vmatprep.subr.mxu0 0.0
        %573 = vmatpush1.msra.mxu0 0.0
        %574 = vmatprep.subr.mxu0 0.0
        %575 = vmatpush1.msra.mxu0 0.0
        %576 = vmatprep.subr.mxu0 0.0
        %577 = vmatpush1.msra.mxu0 0.0
        %578 = vmatprep.subr.mxu0 0.0
        %579 = vmatpush1.msra.mxu0 0.0
        %580 = vmatprep.subr.mxu0 0.0
        %581 = vmatpush1.msra.mxu0 0.0
        %582 = vmatprep.subr.mxu0 0.0
        %583 = vmatpush1.msra.mxu0 0.0
        %584 = vmatprep.subr.mxu0 0.0
        %585 = vmatpush1.msra.mxu0 0.0
        %586 = vmatprep.subr.mxu0 0.0
        %587 = vmatpush1.msra.mxu0 0.0
        %588 = vmatprep.subr.mxu0 0.0
        %589 = vmatpush1.msra.mxu0 0.0
        %590 = vmatprep.subr.mxu0 0.0
        %591 = vmatpush1.msra.mxu0 0.0
        %592 = vmatprep.subr.mxu0 0.0
        %593 = vmatpush1.msra.mxu0 0.0
        %594 = vmatprep.subr.mxu0 0.0
        %595 = vmatpush1.msra.mxu0 0.0
        %596 = vmatprep.subr.mxu0 0.0
        %597 = vmatpush1.msra.mxu0 0.0
        %598 = vmatprep.subr.mxu0 0.0
        %599 = vmatpush1.msra.mxu0 0.0
        %600 = vmatprep.subr.mxu0 0.0
        %601 = vmatpush1.msra.mxu0 0.0
        %602 = vmatprep.subr.mxu0 0.0
        %603 = vmatpush1.msra.mxu0 0.0
        %604 = vmatprep.subr.mxu0 0.0
        %605 = vmatpush1.msra.mxu0 0.0
        %606 = vmatprep.subr.mxu0 0.0
        %607 = vmatpush1.msra.mxu0 0.0
        %608 = vmatprep.subr.mxu0 0.0
        %609 = vmatpush1.msra.mxu0 0.0
        %610 = vmatprep.subr.mxu0 0.0
        %611 = vmatpush1.msra.mxu0 0.0
        %612 = vmatprep.mubr.f32.mxu0 0.0
        %613 = vmatmul.mubr.f32.gmra.mrb[0].mxu0 %v543
        %v614 = vpop.f32.mrb[0].mxu0
        %v615 = vadd.f32 0.0, %v614
        %v616 = vpop.f32.mrb[0].mxu0
        %617 = vmatprep.mubr.f32.mxu0 0.0
        %618 = vmatmul.mubr.f32.gmra.mrb[0].mxu0 %v546
        %v619 = vpop.f32.mrb[0].mxu0
        %v620 = vadd.f32 0.0, %v619
        %v621 = vpop.f32.mrb[0].mxu0
        %622 = vdwg.mxu0
        %v623 = vsel %vm432, %v615, -inf
        %v624 = vsel %vm434, %v620, -inf
        %v625 = vmax.f32 %v623, %v624
        %v626 = vrot.slane %v625, 4
        %v627 = vmax.f32 %v625, %v626
        %v628 = vrot.slane %v627, 2
        %v629 = vmax.f32 %v627, %v628
        %v630 = vrot.slane %v629, 1
        %v631 = vmax.f32 %v629, %v630
        %v632 = vsub.f32 %v615, %v631
        %v633 = vsub.f32 %v620, %v631
        %v634 = vmul.f32 %v632, 1.442695
        %v635 = vpow.pop %v634
        %v636 = vmul.f32 %v633, 1.442695
        %v637 = vpow.pop %v636
        %v638 = vsel %vm432, %v635, 0.0
        %v639 = vsel %vm434, %v637, 0.0
        %v640 = vadd.f32 %v638, %v639
        %v641 = vrot.slane %v640, 4
        %v642 = vadd.f32 %v640, %v641
        %v643 = vrot.slane %v642, 2
        %v644 = vadd.f32 %v642, %v643
        %v645 = vrot.slane %v644, 1
        %v646 = vadd.f32 %v644, %v645
        %v648 = vsel %vm458, %v541, 0
        %v651 = vsel %vm268, %v637, 0
        %653 = vmatprep.subr.mxu0 0.0
        %654 = vmatpush1.msra.mxu0 %v635
        %655 = vmatprep.subr.mxu0 0.0
        %656 = vmatpush1.msra.mxu0 %v651
        %657 = vmatprep.subr.mxu0 0.0
        %658 = vmatpush1.msra.mxu0 0.0
        %659 = vmatprep.subr.mxu0 0.0
        %660 = vmatpush1.msra.mxu0 0.0
        %661 = vmatprep.subr.mxu0 0.0
        %662 = vmatpush1.msra.mxu0 0.0
        %663 = vmatprep.subr.mxu0 0.0
        %664 = vmatpush1.msra.mxu0 0.0
        %665 = vmatprep.subr.mxu0 0.0
        %666 = vmatpush1.msra.mxu0 0.0
        %667 = vmatprep.subr.mxu0 0.0
        %668 = vmatpush1.msra.mxu0 0.0
        %669 = vmatprep.subr.mxu0 0.0
        %670 = vmatpush1.msra.mxu0 0.0
        %671 = vmatprep.subr.mxu0 0.0
        %672 = vmatpush1.msra.mxu0 0.0
        %673 = vmatprep.subr.mxu0 0.0
        %674 = vmatpush1.msra.mxu0 0.0
        %675 = vmatprep.subr.mxu0 0.0
        %676 = vmatpush1.msra.mxu0 0.0
        %677 = vmatprep.subr.mxu0 0.0
        %678 = vmatpush1.msra.mxu0 0.0
        %679 = vmatprep.subr.mxu0 0.0
        %680 = vmatpush1.msra.mxu0 0.0
        %681 = vmatprep.subr.mxu0 0.0
        %682 = vmatpush1.msra.mxu0 0.0
        %683 = vmatprep.subr.mxu0 0.0
        %684 = vmatpush1.msra.mxu0 0.0
        %685 = vmatprep.subr.mxu0 0.0
        %686 = vmatpush1.msra.mxu0 0.0
        %687 = vmatprep.subr.mxu0 0.0
        %688 = vmatpush1.msra.mxu0 0.0
        %689 = vmatprep.subr.mxu0 0.0
        %690 = vmatpush1.msra.mxu0 0.0
        %691 = vmatprep.subr.mxu0 0.0
        %692 = vmatpush1.msra.mxu0 0.0
        %693 = vmatprep.subr.mxu0 0.0
        %694 = vmatpush1.msra.mxu0 0.0
        %695 = vmatprep.subr.mxu0 0.0
        %696 = vmatpush1.msra.mxu0 0.0
        %697 = vmatprep.subr.mxu0 0.0
        %698 = vmatpush1.msra.mxu0 0.0
        %699 = vmatprep.subr.mxu0 0.0
        %700 = vmatpush1.msra.mxu0 0.0
        %701 = vmatprep.subr.mxu0 0.0
        %702 = vmatpush1.msra.mxu0 0.0
        %703 = vmatprep.subr.mxu0 0.0
        %704 = vmatpush1.msra.mxu0 0.0
        %705 = vmatprep.subr.mxu0 0.0
        %706 = vmatpush1.msra.mxu0 0.0
        %707 = vmatprep.subr.mxu0 0.0
        %708 = vmatpush1.msra.mxu0 0.0
        %709 = vmatprep.subr.mxu0 0.0
        %710 = vmatpush1.msra.mxu0 0.0
        %711 = vmatprep.subr.mxu0 0.0
        %712 = vmatpush1.msra.mxu0 0.0
        %713 = vmatprep.subr.mxu0 0.0
        %714 = vmatpush1.msra.mxu0 0.0
        %715 = vmatprep.subr.mxu0 0.0
        %716 = vmatpush1.msra.mxu0 0.0
        %717 = vmatprep.mubr.f32.mxu0 0.0
        %718 = vmatmul.mubr.f32.gmra.mrb[0].mxu0 %v648
        %v719 = vpop.f32.mrb[0].mxu0
        %v720 = vadd.f32 0.0, %v719
        %v721 = vpop.f32.mrb[0].mxu0
        %722 = vdwg.mxu0
        %v723 = vrcp.pop %v646
        %v724 = vmul.f32 %v720, %v723
        %v725 = vadd.f32 %v536, %v724
        %726 = vst.msk [vmem:[%s240] sm:$0xff] %vm432, %v725
        %s727 = sand.u32 %s141, 1
        %s728 = scalar_lea.sflag [#allocation3], %s727
        %s729 = sand.u32 %s141, 1
        %s730 = smul.addr %s729, 8
        %s731 = scalar_lea.vmem [#allocation2], %s730
        // Predicated region
        $region37: #{attention1d_pallas.1} parent=35 // pred_check
          %p732 = pneg %p151
        $region38: #{attention1d_pallas.1} parent=35 // pred_check_branch
          %734 = sbr.rel (%p732) target = $region40
        $region39: #{attention1d_pallas.1} parent=35 // pred_region
          %s736 = ssub.s32 128, 128
          %737 = vsyncadd %s728, %s736
          %s738 = sadd.s32 %s23, %s22
          %s739 = smul.addr %s738, 128
          %s740 = scalar_lea.hbm %s4, %s739
          %s742 = sshll.u32 %s731, 4
          %s743 = int_to_ptr.vmem [resolvable:$true] %s742
          %745 = dma.vmem_to_hbm [thread:$0]  %s743, 128, %s740, %s728
        $region40: #{attention1d_pallas.1} parent=35 // pred_fallthru
          _
      $region36: #{attention1d_pallas.1} parent=5 // pred_fallthru
        _
      %p746 = scmp.le.s32.totalorder 2, %s13
      // Predicated region
      $region41: #{attention1d_pallas.1} parent=5 // pred_check
        %p747 = pneg %p746
      $region42: #{attention1d_pallas.1} parent=5 // pred_check_branch
        %749 = sbr.rel (%p747) target = $region44
      $region43: #{attention1d_pallas.1} parent=5 // pred_region
        %s750 = ssub.s32 %s13, 2
        // Predicated region
        $region45: #{attention1d_pallas.1} parent=43 // pred_check
          %p751 = pneg %p157
        $region46: #{attention1d_pallas.1} parent=43 // pred_check_branch
          %753 = sbr.rel (%p751) target = $region48
        $region47: #{attention1d_pallas.1} parent=43 // pred_region
          %s754 = sand.u32 %s142, 1
          %s755 = scalar_lea.sflag [#allocation3], %s754
          %s756 = sand.u32 %s142, 1
          %s757 = smul.addr %s756, 8
          %s758 = scalar_lea.vmem [#allocation2], %s757
          %759 = dma.done %s755, 128
        $region48: #{attention1d_pallas.1} parent=43 // pred_fallthru
          _
      $region44: #{attention1d_pallas.1} parent=5 // pred_fallthru
        _
    $region6: #{attention1d_pallas.1} parent=1 // loop_footer
      %s17 = sadd.s32 1, %s13
    $region7: #{attention1d_pallas.1} parent=1 // loop_footer_branch
      %12 = sbr.rel target = $region3
    $region8: #{attention1d_pallas.1} parent=1 // loop_exit
      _
    %760 = vsyncpa [#allocation3], 1
    %s761 = scalar_lea.sflag [#allocation3], 1
    %762 = vsyncpa %s761, 1

</llo_original>
